<compile_context>
chip_gen: v7x
topology: tpu7x:2x2x1
jax: 0.10.0
libtpu: 0.0.40
codegen_flags: <defaults>
</compile_context>

<pallas_src>
import math

import jax
import jax.numpy as jnp
from jax.experimental import pallas as pl
from jax.experimental.pallas import tpu as pltpu

_INV_SQRT2 = 1.0 / math.sqrt(2.0)
_LN_EPS = 1e-5


def ffn_kernel(x_ref, w1_ref, b1_ref, w2_ref, b2_ref,
               wg_ref, bg_ref, gamma_ref, beta_ref, o_ref, acc_ref):
    f = pl.program_id(1)
    nf = pl.num_programs(1)

    @pl.when(f == 0)
    def _init():
        acc_ref[...] = jnp.zeros_like(acc_ref)

    # bf16 MXU matmuls with f32 accumulation.
    x_bf = x_ref[...].astype(jnp.bfloat16)                      # (tm, D)
    h = jnp.dot(x_bf, w1_ref[...], preferred_element_type=jnp.float32)
    h = h + b1_ref[...]                                         # (tm, tf), f32
    # exact (erf) GELU, matching torch.nn.functional.gelu default
    h = 0.5 * h * (1.0 + jax.lax.erf(h * _INV_SQRT2))
    # dropout -> identity (eval mode)
    acc_ref[...] += jnp.dot(h.astype(jnp.bfloat16), w2_ref[...],
                            preferred_element_type=jnp.float32)

    @pl.when(f == nf - 1)
    def _finalize():
        x = x_ref[...].astype(jnp.float32)                      # (tm, D)
        # professional gate as an f32 lane reduction (free wrt MXU slots)
        gate_logit = jnp.sum(x * wg_ref[...], axis=-1, keepdims=True) + bg_ref[...]
        gate = jax.nn.sigmoid(gate_logit)                       # already in [0, 1]
        out = (acc_ref[...] + b2_ref[...]) * gate

        # residual + LayerNorm over last dim (single-pass mean / variance)
        y = out + x
        inv_d = 1.0 / y.shape[-1]
        s = jnp.sum(y, axis=-1, keepdims=True)
        ss = jnp.sum(y * y, axis=-1, keepdims=True)
        mean = s * inv_d
        var = ss * inv_d - mean * mean
        y_norm = (y - mean) * jax.lax.rsqrt(var + _LN_EPS)
        o_ref[...] = (y_norm * gamma_ref[...] + beta_ref[...]).astype(o_ref.dtype)


def _round_up(n, m):
    return (n + m - 1) // m * m


def original_feedforward(x, params, *, tm=256, tf=512):
    """x: (batch, seq, d_model) float32. Returns same shape/dtype."""
    w1, b1, w2, b2, wg_row, bg, gamma, beta = params
    B, S, D = x.shape
    F = w1.shape[1]
    N = B * S
    x2d = x.reshape(N, D)

    # Row tile: large (MXU-friendly) but never bigger than needed; multiple of 8.
    tm = max(8, min(tm, _round_up(N, 8)))
    # d_ff tile: multiple of 128 on the lane axis, or fall back to full d_ff.
    if F % 128 == 0:
        tf = min(tf, F)
    else:
        tf = F
    nrows = pl.cdiv(N, tm)
    nf = pl.cdiv(F, tf)

    # bf16 weights: MXU-peak throughput and half the VMEM footprint.
    w1_bf = w1.astype(jnp.bfloat16)
    w2_bf = w2.astype(jnp.bfloat16)

    const = lambda i, f: (0, 0)

    out2d = pl.pallas_call(
        ffn_kernel,
        out_shape=jax.ShapeDtypeStruct((N, D), x.dtype),
        grid_spec=pltpu.PrefetchScalarGridSpec(
            num_scalar_prefetch=0,
            grid=(nrows, nf),                                  # reduction axis last
            in_specs=[
                pl.BlockSpec((tm, D), lambda i, f: (i, 0)),    # x rows (resident over f)
                pl.BlockSpec((D, tf), lambda i, f: (0, f)),    # W1 block
                pl.BlockSpec((1, tf), lambda i, f: (0, f)),    # b1 block
                pl.BlockSpec((tf, D), lambda i, f: (f, 0)),    # W2 block
                pl.BlockSpec((1, D), const),                   # b2
                pl.BlockSpec((1, D), const),                   # Wg row
                pl.BlockSpec((1, 1), const),                   # bg
                pl.BlockSpec((1, D), const),                   # gamma
                pl.BlockSpec((1, D), const),                   # beta
            ],
            out_specs=pl.BlockSpec((tm, D), lambda i, f: (i, 0)),
            scratch_shapes=[pltpu.VMEM((tm, D), jnp.float32)],  # f32 accumulator
        ),
        compiler_params=pltpu.CompilerParams(
            dimension_semantics=("parallel", "arbitrary"),
            vmem_limit_bytes=48 * 1024 * 1024,
        ),
    )(x2d, w1_bf, b1, w2_bf, b2, wg_row, bg, gamma, beta)

    return out2d.reshape(B, S, D)


def init_params(key, d_model, d_ff):
    """Deterministic init mimicking nn.Linear / nn.LayerNorm defaults."""
    ks = jax.random.split(key, 6)

    def linear_init(kw, kb, fan_in, fan_out):
        bound = 1.0 / math.sqrt(fan_in)
        w = jax.random.uniform(kw, (fan_in, fan_out), jnp.float32, -bound, bound)
        b = jax.random.uniform(kb, (1, fan_out), jnp.float32, -bound, bound)
        return w, b

    w1, b1 = linear_init(ks[0], ks[1], d_model, d_ff)
    w2, b2 = linear_init(ks[2], ks[3], d_ff, d_model)
    wg, bg = linear_init(ks[4], ks[5], d_model, 1)
    wg_row = wg.reshape(1, d_model)          # gate weight stored as a lane row
    bg = bg.reshape(1, 1)
    gamma = jnp.ones((1, d_model), jnp.float32)
    beta = jnp.zeros((1, d_model), jnp.float32)
    return (w1, b1, w2, b2, wg_row, bg, gamma, beta)


def reference(x, params):
    """Plain-JAX f32 reference of the PyTorch forward (eval mode)."""
    w1, b1, w2, b2, wg_row, bg, gamma, beta = params
    gate = jax.nn.sigmoid(jnp.sum(x * wg_row[0], axis=-1, keepdims=True) + bg[0, 0])
    h = jax.nn.gelu(x @ w1 + b1[0], approximate=False)
    out = h @ w2 + b2[0]
    out = out * jnp.clip(gate, 0.0, 1.0)
    y = out + x
    mean = jnp.mean(y, axis=-1, keepdims=True)
    var = jnp.mean(jnp.square(y - mean), axis=-1, keepdims=True)
    return (y - mean) / jnp.sqrt(var + _LN_EPS) * gamma[0] + beta[0]


if __name__ == "__main__":
    key = jax.random.PRNGKey(0)

    # (d_model, d_ff, batch, seq, tf):
    #  - first config exercises the F-tiled accumulation loop (nf=2) with a
    #    lane-dense (D=128) output block
    #  - second config is the original toy shape (tf falls back to full d_ff)
    configs = [
        (128, 256, 2, 16, 128),
        (32, 64, 2, 8, 512),
    ]
    for d_model, d_ff, batch, seq, tf in configs:
        kx, kp, key = jax.random.split(key, 3)
        x = jax.random.normal(kx, (batch, seq, d_model), jnp.float32)
        params = init_params(kp, d_model, d_ff)

        out = jax.block_until_ready(original_feedforward(x, params, tf=tf))
        ref = reference(x, params)

        assert out.shape == (batch, seq, d_model)
        err = jnp.max(jnp.abs(out - ref))
        # bf16 MXU inputs with f32 accumulation -> relaxed tolerance vs f32 ref
        assert jnp.allclose(out, ref, atol=3e-2, rtol=3e-2), f"max abs err = {err}"

    print("KERNEL_OK")
</pallas_src>

<mosaic_0001>
module attributes {stable_mosaic.version = 11 : i64} {
  func.func @ffn_kernel(%arg0: i32, %arg1: i32, %arg2: memref<32x128xf32, #tpu.memory_space<vmem>>, %arg3: memref<128x128xbf16, #tpu.memory_space<vmem>>, %arg4: memref<1x128xf32, #tpu.memory_space<vmem>>, %arg5: memref<128x128xbf16, #tpu.memory_space<vmem>>, %arg6: memref<1x128xf32, #tpu.memory_space<vmem>>, %arg7: memref<1x128xf32, #tpu.memory_space<vmem>>, %arg8: memref<1x1xf32, #tpu.memory_space<vmem>>, %arg9: memref<1x128xf32, #tpu.memory_space<vmem>>, %arg10: memref<1x128xf32, #tpu.memory_space<vmem>>, %arg11: memref<32x128xf32, #tpu.memory_space<vmem>>, %arg12: memref<32x128xf32, #tpu.memory_space<vmem>>) attributes {dimension_semantics = [#tpu.dimension_semantics<parallel>, #tpu.dimension_semantics<arbitrary>], iteration_bounds = array<i64: 1, 2>, scalar_prefetch = 0 : i64, scratch_operands = 1 : i64, tpu.core_type = #tpu.core_type<tc>, window_params = [{transform_indices = @transform_0, window_bounds = array<i64: 32, 128>}, {transform_indices = @transform_1, window_bounds = array<i64: 128, 128>}, {transform_indices = @transform_2, window_bounds = array<i64: 1, 128>}, {transform_indices = @transform_3, window_bounds = array<i64: 128, 128>}, {pipeline_mode = #tpu.pipeline_mode<synchronous>, transform_indices = @transform_4, window_bounds = array<i64: 1, 128>}, {pipeline_mode = #tpu.pipeline_mode<synchronous>, transform_indices = @transform_5, window_bounds = array<i64: 1, 128>}, {pipeline_mode = #tpu.pipeline_mode<synchronous>, transform_indices = @transform_6, window_bounds = array<i64: 1, 1>}, {pipeline_mode = #tpu.pipeline_mode<synchronous>, transform_indices = @transform_7, window_bounds = array<i64: 1, 128>}, {pipeline_mode = #tpu.pipeline_mode<synchronous>, transform_indices = @transform_8, window_bounds = array<i64: 1, 128>}, {transform_indices = @transform_9, window_bounds = array<i64: 32, 128>}]} {
    %c0_i32 = arith.constant 0 : i32
    %0 = arith.cmpi eq, %arg1, %c0_i32 : i32
    %1 = arith.extui %0 : i1 to i32
    %c0_i32_0 = arith.constant 0 : i32
    %2 = arith.cmpi ne, %1, %c0_i32_0 : i32
    scf.if %2 {
      %cst_17 = arith.constant 0.000000e+00 : f32
      %27 = vector.broadcast %cst_17 : f32 to vector<32x128xf32>
      %c0_18 = arith.constant 0 : index
      %c0_19 = arith.constant 0 : index
      %28 = vector.load %arg12[%c0_18, %c0_19] : memref<32x128xf32, #tpu.memory_space<vmem>>, vector<32x128xf32>
      tpu.vector_store %arg12[%c0_18, %c0_19], %27 {strides = array<i32>} : memref<32x128xf32, #tpu.memory_space<vmem>>, vector<32x128xf32>,
    } else {
    }
    %c0 = arith.constant 0 : index
    %c0_1 = arith.constant 0 : index
    %3 = vector.load %arg2[%c0, %c0_1] : memref<32x128xf32, #tpu.memory_space<vmem>>, vector<32x128xf32>
    %4 = arith.truncf %3 : vector<32x128xf32> to vector<32x128xbf16>
    %c0_2 = arith.constant 0 : index
    %c0_3 = arith.constant 0 : index
    %5 = vector.load %arg3[%c0_2, %c0_3] : memref<128x128xbf16, #tpu.memory_space<vmem>>, vector<128x128xbf16>
    %cst = arith.constant dense<0.000000e+00> : vector<32x128xf32>
    %6 = tpu.matmul %4, %5, %cst {dimension_numbers = #tpu.dot_dimension_numbers<[1], [0], [0], [1], [0, 0, 1, 1], [], []>} : vector<32x128xbf16>, vector<128x128xbf16>, vector<32x128xf32> -> vector<32x128xf32>
    %c0_4 = arith.constant 0 : index
    %c0_5 = arith.constant 0 : index
    %7 = vector.load %arg4[%c0_4, %c0_5] : memref<1x128xf32, #tpu.memory_space<vmem>>, vector<1x128xf32>
    %8 = vector.broadcast %7 : vector<1x128xf32> to vector<32x128xf32>
    %9 = arith.addf %6, %8 : vector<32x128xf32>
    %cst_6 = arith.constant 5.000000e-01 : f32
    %10 = vector.broadcast %cst_6 : f32 to vector<32x128xf32>
    %11 = arith.mulf %10, %9 : vector<32x128xf32>
    %cst_7 = arith.constant 0.707106769 : f32
    %12 = vector.broadcast %cst_7 : f32 to vector<32x128xf32>
    %13 = arith.mulf %9, %12 : vector<32x128xf32>
    %14 = math.erf %13 : vector<32x128xf32>
    %cst_8 = arith.constant 1.000000e+00 : f32
    %15 = vector.broadcast %cst_8 : f32 to vector<32x128xf32>
    %16 = arith.addf %15, %14 : vector<32x128xf32>
    %17 = arith.mulf %11, %16 : vector<32x128xf32>
    %c0_9 = arith.constant 0 : index
    %c0_10 = arith.constant 0 : index
    %18 = vector.load %arg12[%c0_9, %c0_10] : memref<32x128xf32, #tpu.memory_space<vmem>>, vector<32x128xf32>
    %19 = arith.truncf %17 : vector<32x128xf32> to vector<32x128xbf16>
    %c0_11 = arith.constant 0 : index
    %c0_12 = arith.constant 0 : index
    %20 = vector.load %arg5[%c0_11, %c0_12] : memref<128x128xbf16, #tpu.memory_space<vmem>>, vector<128x128xbf16>
    %cst_13 = arith.constant dense<0.000000e+00> : vector<32x128xf32>
    %21 = tpu.matmul %19, %20, %cst_13 {dimension_numbers = #tpu.dot_dimension_numbers<[1], [0], [0], [1], [0, 0, 1, 1], [], []>} : vector<32x128xbf16>, vector<128x128xbf16>, vector<32x128xf32> -> vector<32x128xf32>
    %22 = arith.addf %18, %21 : vector<32x128xf32>
    %c0_14 = arith.constant 0 : index
    %c0_15 = arith.constant 0 : index
    %23 = vector.load %arg12[%c0_14, %c0_15] : memref<32x128xf32, #tpu.memory_space<vmem>>, vector<32x128xf32>
    tpu.vector_store %arg12[%c0_14, %c0_15], %22 {strides = array<i32>} : memref<32x128xf32, #tpu.memory_space<vmem>>, vector<32x128xf32>,
    %c1_i32 = arith.constant 1 : i32
    %24 = arith.cmpi eq, %arg1, %c1_i32 : i32
    %25 = arith.extui %24 : i1 to i32
    %c0_i32_16 = arith.constant 0 : i32
    %26 = arith.cmpi ne, %25, %c0_i32_16 : i32
    scf.if %26 {
      %c0_17 = arith.constant 0 : index
      %c0_18 = arith.constant 0 : index
      %27 = vector.load %arg2[%c0_17, %c0_18] : memref<32x128xf32, #tpu.memory_space<vmem>>, vector<32x128xf32>
      %c0_19 = arith.constant 0 : index
      %c0_20 = arith.constant 0 : index
      %28 = vector.load %arg7[%c0_19, %c0_20] : memref<1x128xf32, #tpu.memory_space<vmem>>, vector<1x128xf32>
      %29 = vector.broadcast %28 : vector<1x128xf32> to vector<32x128xf32>
      %30 = arith.mulf %27, %29 : vector<32x128xf32>
      %cst_21 = arith.constant dense<0.000000e+00> : vector<32xf32>
      %31 = vector.multi_reduction <add>, %30, %cst_21 [1] : vector<32x128xf32> to vector<32xf32>
      %32 = vector.shape_cast %31 : vector<32xf32> to vector<32x1xf32>
      %c0_22 = arith.constant 0 : index
      %c0_23 = arith.constant 0 : index
      %33 = vector.load %arg8[%c0_22, %c0_23] : memref<1x1xf32, #tpu.memory_space<vmem>>, vector<1x1xf32>
      %34 = vector.broadcast %33 : vector<1x1xf32> to vector<32x1xf32>
      %35 = arith.addf %32, %34 : vector<32x1xf32>
      %36 = arith.negf %35 : vector<32x1xf32>
      %37 = math.exp %36 : vector<32x1xf32>
      %cst_24 = arith.constant 1.000000e+00 : f32
      %38 = vector.broadcast %cst_24 : f32 to vector<32x1xf32>
      %39 = arith.addf %38, %37 : vector<32x1xf32>
      %40 = arith.divf %38, %39 : vector<32x1xf32>
      %c0_25 = arith.constant 0 : index
      %c0_26 = arith.constant 0 : index
      %41 = vector.load %arg12[%c0_25, %c0_26] : memref<32x128xf32, #tpu.memory_space<vmem>>, vector<32x128xf32>
      %c0_27 = arith.constant 0 : index
      %c0_28 = arith.constant 0 : index
      %42 = vector.load %arg6[%c0_27, %c0_28] : memref<1x128xf32, #tpu.memory_space<vmem>>, vector<1x128xf32>
      %43 = vector.broadcast %42 : vector<1x128xf32> to vector<32x128xf32>
      %44 = arith.addf %41, %43 : vector<32x128xf32>
      %45 = vector.broadcast %40 : vector<32x1xf32> to vector<32x128xf32>
      %46 = arith.mulf %44, %45 : vector<32x128xf32>
      %47 = arith.addf %46, %27 : vector<32x128xf32>
      %cst_29 = arith.constant dense<0.000000e+00> : vector<32xf32>
      %48 = vector.multi_reduction <add>, %47, %cst_29 [1] : vector<32x128xf32> to vector<32xf32>
      %49 = vector.shape_cast %48 : vector<32xf32> to vector<32x1xf32>
      %50 = arith.mulf %47, %47 : vector<32x128xf32>
      %cst_30 = arith.constant dense<0.000000e+00> : vector<32xf32>
      %51 = vector.multi_reduction <add>, %50, %cst_30 [1] : vector<32x128xf32> to vector<32xf32>
      %52 = vector.shape_cast %51 : vector<32xf32> to vector<32x1xf32>
      %cst_31 = arith.constant 7.812500e-03 : f32
      %53 = vector.broadcast %cst_31 : f32 to vector<32x1xf32>
      %54 = arith.mulf %49, %53 : vector<32x1xf32>
      %cst_32 = arith.constant 7.812500e-03 : f32
      %55 = vector.broadcast %cst_32 : f32 to vector<32x1xf32>
      %56 = arith.mulf %52, %55 : vector<32x1xf32>
      %57 = arith.mulf %54, %54 : vector<32x1xf32>
      %58 = arith.subf %56, %57 : vector<32x1xf32>
      %59 = vector.broadcast %54 : vector<32x1xf32> to vector<32x128xf32>
      %60 = arith.subf %47, %59 : vector<32x128xf32>
      %cst_33 = arith.constant 9.99999974E-6 : f32
      %61 = vector.broadcast %cst_33 : f32 to vector<32x1xf32>
      %62 = arith.addf %58, %61 : vector<32x1xf32>
      %63 = math.rsqrt %62 : vector<32x1xf32>
      %64 = vector.broadcast %63 : vector<32x1xf32> to vector<32x128xf32>
      %65 = arith.mulf %60, %64 : vector<32x128xf32>
      %c0_34 = arith.constant 0 : index
      %c0_35 = arith.constant 0 : index
      %66 = vector.load %arg9[%c0_34, %c0_35] : memref<1x128xf32, #tpu.memory_space<vmem>>, vector<1x128xf32>
      %67 = vector.broadcast %66 : vector<1x128xf32> to vector<32x128xf32>
      %68 = arith.mulf %65, %67 : vector<32x128xf32>
      %c0_36 = arith.constant 0 : index
      %c0_37 = arith.constant 0 : index
      %69 = vector.load %arg10[%c0_36, %c0_37] : memref<1x128xf32, #tpu.memory_space<vmem>>, vector<1x128xf32>
      %70 = vector.broadcast %69 : vector<1x128xf32> to vector<32x128xf32>
      %71 = arith.addf %68, %70 : vector<32x128xf32>
      %c0_38 = arith.constant 0 : index
      %c0_39 = arith.constant 0 : index
      %72 = vector.load %arg11[%c0_38, %c0_39] : memref<32x128xf32, #tpu.memory_space<vmem>>, vector<32x128xf32>
      tpu.vector_store %arg11[%c0_38, %c0_39], %71 {strides = array<i32>} : memref<32x128xf32, #tpu.memory_space<vmem>>, vector<32x128xf32>,
    } else {
    }
    return
  }
  func.func @transform_0(%arg0: i32, %arg1: i32) -> (i32, i32) {
    %c0_i32 = arith.constant 0 : i32
    %c0_i32_0 = arith.constant 0 : i32
    return %arg0, %c0_i32 : i32, i32
  }
  func.func @transform_1(%arg0: i32, %arg1: i32) -> (i32, i32) {
    %c0_i32 = arith.constant 0 : i32
    %c0_i32_0 = arith.constant 0 : i32
    return %c0_i32, %arg1 : i32, i32
  }
  func.func @transform_2(%arg0: i32, %arg1: i32) -> (i32, i32) {
    %c0_i32 = arith.constant 0 : i32
    %c0_i32_0 = arith.constant 0 : i32
    return %c0_i32, %arg1 : i32, i32
  }
  func.func @transform_3(%arg0: i32, %arg1: i32) -> (i32, i32) {
    %c0_i32 = arith.constant 0 : i32
    %c0_i32_0 = arith.constant 0 : i32
    return %arg1, %c0_i32 : i32, i32
  }
  func.func @transform_4(%arg0: i32, %arg1: i32) -> (i32, i32) {
    %c0_i32 = arith.constant 0 : i32
    %c0_i32_0 = arith.constant 0 : i32
    %c0_i32_1 = arith.constant 0 : i32
    return %c0_i32, %c0_i32_0 : i32, i32
  }
  func.func @transform_5(%arg0: i32, %arg1: i32) -> (i32, i32) {
    %c0_i32 = arith.constant 0 : i32
    %c0_i32_0 = arith.constant 0 : i32
    %c0_i32_1 = arith.constant 0 : i32
    return %c0_i32, %c0_i32_0 : i32, i32
  }
  func.func @transform_6(%arg0: i32, %arg1: i32) -> (i32, i32) {
    %c0_i32 = arith.constant 0 : i32
    %c0_i32_0 = arith.constant 0 : i32
    %c0_i32_1 = arith.constant 0 : i32
    return %c0_i32, %c0_i32_0 : i32, i32
  }
  func.func @transform_7(%arg0: i32, %arg1: i32) -> (i32, i32) {
    %c0_i32 = arith.constant 0 : i32
    %c0_i32_0 = arith.constant 0 : i32
    %c0_i32_1 = arith.constant 0 : i32
    return %c0_i32, %c0_i32_0 : i32, i32
  }
  func.func @transform_8(%arg0: i32, %arg1: i32) -> (i32, i32) {
    %c0_i32 = arith.constant 0 : i32
    %c0_i32_0 = arith.constant 0 : i32
    %c0_i32_1 = arith.constant 0 : i32
    return %c0_i32, %c0_i32_0 : i32, i32
  }
  func.func @transform_9(%arg0: i32, %arg1: i32) -> (i32, i32) {
    %c0_i32 = arith.constant 0 : i32
    %c0_i32_0 = arith.constant 0 : i32
    return %arg0, %c0_i32 : i32, i32
  }
}

</mosaic_0001>

<llo_original>
// kernel: tpu_custom_call.1
$region0: #{tpu_custom_call.1}
  #allocation0 [shape = 'u32[]', space=smem, size = 0x4, offset = 0x4, fixed_abs, tag = 'smem constant byte address 0x4 - core index']
  #allocation1 [shape = 'u32[144,128]{1,0:T(1,128)}', space=vmem, size = 0x12000, scoped, tag = 'internal scratch']
  #allocation2 [shape = 'f32[32,128]{1,0:T(8,128)}', space=vmem, size = 0x4000, scoped, tag = 'scratch operand']
  #allocation3 [shape = 'f32[1,1]{1,0:T(1,128)S(1)}', space=vmem, size = 0x200, scoped, tag = 'scoped memory for tpu_custom_call.1']
  %s0 = inlined_call_operand.hbm [shape: f32[32,128], index: 0, kind: input, shape index: {}]
  %s1 = inlined_call_operand.hbm [shape: bf16[128,256], index: 1, kind: input, shape index: {}]
  %s2 = inlined_call_operand.vmem [shape: f32[1,256], index: 2, kind: input, shape index: {}]
  %s3 = inlined_call_operand.hbm [shape: bf16[256,128], index: 3, kind: input, shape index: {}]
  %s4 = inlined_call_operand.vmem [shape: f32[1,128], index: 4, kind: input, shape index: {}]
  %s5 = inlined_call_operand.vmem [shape: f32[1,128], index: 5, kind: input, shape index: {}]
  %s6 = inlined_call_operand.<no memory space> [shape: f32[1,1], index: 6, kind: input, shape index: {}]
  %s7 = inlined_call_operand.vmem [shape: f32[1,128], index: 7, kind: input, shape index: {}]
  %s8 = inlined_call_operand.vmem [shape: f32[1,128], index: 8, kind: input, shape index: {}]
  %s9 = inlined_call_operand.hbm [shape: f32[32,128], index: 9, kind: output, shape index: {}]
  %s10 = sld [smem:[#allocation0]]
  $region89: #{tpu_custom_call.1} parent=0
    _
  %s12 = ssub.s32 1, %s10
  %s13 = scalar_select 0, %s12, %s10
  %v14 = vstv %s6
  %15 = vst [vmem:[#allocation3] sm:$0x1] %v14
  $region1: #{tpu_custom_call.1} parent=0
    #allocation4 [shape = 'u8[16384]{0}', space=vmem, size = 0x4000, scoped, tag = 'input window, operand 0, single buffered']
    #allocation5 [shape = 's32[2]{0}', space=sflag, size = 0x8, scoped, tag = 'scoped memory for tpu_custom_call.1']
    #allocation6 [shape = 's32[2]{0}', space=sflag, size = 0x8, scoped, tag = 'scoped memory for tpu_custom_call.1']
    #allocation7 [shape = 'u8[65536]{0}', space=vmem, size = 0x10000, scoped, tag = 'input window, operand 1']
    #allocation8 [shape = 's32[2]{0}', space=sflag, size = 0x8, scoped, tag = 'scoped memory for tpu_custom_call.1']
    #allocation9 [shape = 'u8[65536]{0}', space=vmem, size = 0x10000, scoped, tag = 'input window, operand 3']
    #allocation10 [shape = 'u8[16384]{0}', space=vmem, size = 0x4000, scoped, tag = 'output window, operand 0, single buffered']
    %16 = vsyncpa [#allocation5], 0
    %17 = vsyncpa [#allocation8], 0
    %s18 = scalar_lea.sflag [#allocation8], 1
    %19 = vsyncpa %s18, 0
    %20 = vsyncpa [#allocation6], 0
    loop: start=0, step=1, limit=4
    $region2: #{tpu_custom_call.1} parent=1 // loop_pre_header
      _
    $region3: #{tpu_custom_call.1} parent=1 // loop_header
      %s22 = sphi 0, %s26
      %p23 = scmp.ge.s32.totalorder %s22, 4
      %s29 = sphi 0, %s41
      %s30 = sphi 0, %s37
      %s31 = sphi 0, %s29
      %s32 = sphi 0, %s30
      %s33 = sphi 0, %s31
      %s34 = sphi 0, %s32
      %s44 = sphi 0, %s46
      %s47 = sphi 0, %s44
      %s48 = sphi 0, %s47
      %s64 = sphi 0, %s48
      %s70 = sphi 0, %s72
      %s73 = sphi 0, %s70
      %s74 = sphi 0, %s73
      %s90 = sphi 0, %s74
      %s96 = sphi 0, %s98
      %s99 = sphi 0, %s96
      %s100 = sphi 0, %s99
      %s116 = sphi 0, %s100
      %s122 = sphi 0, %s124
      %s125 = sphi 0, %s122
      %s126 = sphi 0, %s125
      %s142 = sphi 0, %s126
      %s146 = sphi 0, %s146
      %s148 = sphi 0, %s146
      %s149 = sphi 0, %s148
      %s163 = sphi 0, %s149
      %s167 = sphi 0, %s167
      %s169 = sphi 0, %s167
      %s170 = sphi 0, %s169
      %s184 = sphi 0, %s170
      %s188 = sphi 0, %s188
      %s190 = sphi 0, %s188
      %s191 = sphi 0, %s190
      %s205 = sphi 0, %s191
      %s209 = sphi 0, %s209
      %s211 = sphi 0, %s209
      %s212 = sphi 0, %s211
      %s226 = sphi 0, %s212
      %s230 = sphi 0, %s230
      %s232 = sphi 0, %s230
      %s233 = sphi 0, %s232
      %s247 = sphi 0, %s233
      %s253 = sphi 0, %s255
      %s256 = sphi 0, %s253
      %s257 = sphi 0, %s256
      %s273 = sphi 0, %s257
    $region4: #{tpu_custom_call.1} parent=1 // loop_header_branch
      %25 = sbr.rel (%p23) target = $region8
    $region5: #{tpu_custom_call.1} parent=1 // loop_body
      %s27 = ssub.s32 %s22, 1
      %s28 = ssub.s32 %s22, 2
      %s35 = sadd.s32 1, %s30
      %p36 = scmp.ge.s32.totalorder %s35, 2
      %s37 = scalar_select %p36, 0, %s35
      %s38 = sadd.s32 1, %s29
      %s39 = scalar_select %p36, %s38, %s29
      %p40 = scmp.ge.s32.totalorder %s39, 1
      %s41 = scalar_select %p40, 0, %s39
      %s42 = ssub.s32 %s29, %s41
      %p43 = scmp.eq.s32.totalorder %s42, 0
      %s45 = sadd.s32 %s44, 1
      %s46 = scalar_select %p43, %s44, %s45
      %p49 = pneg %p43
      %p50 = scmp.eq.s32.totalorder %s22, 1
      %p51 = por %p49, %p50
      %p52 = scmp.ne.s32.totalorder %s44, %s47
      %p53 = scmp.eq.s32.totalorder %s22, 0
      %p54 = por %p52, %p53
      %p55 = scmp.ne.s32.totalorder %s44, %s47
      %p56 = scmp.eq.s32.totalorder %s27, 1
      %p57 = por %p55, %p56
      %p58 = scmp.ne.s32.totalorder %s47, %s48
      %p59 = scmp.eq.s32.totalorder %s27, 0
      %p60 = por %p58, %p59
      %p61 = scmp.ne.s32.totalorder %s47, %s48
      %p62 = scmp.eq.s32.totalorder %s28, 1
      %p63 = por %p61, %p62
      %p65 = scmp.ne.s32.totalorder %s48, %s64
      %p66 = scmp.eq.s32.totalorder %s28, 0
      %p67 = por %p65, %p66
      %s68 = ssub.s32 %s30, %s37
      %p69 = scmp.eq.s32.totalorder %s68, 0
      %s71 = sadd.s32 %s70, 1
      %s72 = scalar_select %p69, %s70, %s71
      %p75 = pneg %p69
      %p76 = scmp.eq.s32.totalorder %s22, 1
      %p77 = por %p75, %p76
      %p78 = scmp.ne.s32.totalorder %s70, %s73
      %p79 = scmp.eq.s32.totalorder %s22, 0
      %p80 = por %p78, %p79
      %p81 = scmp.ne.s32.totalorder %s70, %s73
      %p82 = scmp.eq.s32.totalorder %s27, 1
      %p83 = por %p81, %p82
      %p84 = scmp.ne.s32.totalorder %s73, %s74
      %p85 = scmp.eq.s32.totalorder %s27, 0
      %p86 = por %p84, %p85
      %p87 = scmp.ne.s32.totalorder %s73, %s74
      %p88 = scmp.eq.s32.totalorder %s28, 1
      %p89 = por %p87, %p88
      %p91 = scmp.ne.s32.totalorder %s74, %s90
      %p92 = scmp.eq.s32.totalorder %s28, 0
      %p93 = por %p91, %p92
      %s94 = ssub.s32 %s30, %s37
      %p95 = scmp.eq.s32.totalorder %s94, 0
      %s97 = sadd.s32 %s96, 1
      %s98 = scalar_select %p95, %s96, %s97
      %p101 = pneg %p95
      %p102 = scmp.eq.s32.totalorder %s22, 1
      %p103 = por %p101, %p102
      %p104 = scmp.ne.s32.totalorder %s96, %s99
      %p105 = scmp.eq.s32.totalorder %s22, 0
      %p106 = por %p104, %p105
      %p107 = scmp.ne.s32.totalorder %s96, %s99
      %p108 = scmp.eq.s32.totalorder %s27, 1
      %p109 = por %p107, %p108
      %p110 = scmp.ne.s32.totalorder %s99, %s100
      %p111 = scmp.eq.s32.totalorder %s27, 0
      %p112 = por %p110, %p111
      %p113 = scmp.ne.s32.totalorder %s99, %s100
      %p114 = scmp.eq.s32.totalorder %s28, 1
      %p115 = por %p113, %p114
      %p117 = scmp.ne.s32.totalorder %s100, %s116
      %p118 = scmp.eq.s32.totalorder %s28, 0
      %p119 = por %p117, %p118
      %s120 = ssub.s32 %s30, %s37
      %p121 = scmp.eq.s32.totalorder %s120, 0
      %s123 = sadd.s32 %s122, 1
      %s124 = scalar_select %p121, %s122, %s123
      %p127 = pneg %p121
      %p128 = scmp.eq.s32.totalorder %s22, 1
      %p129 = por %p127, %p128
      %p130 = scmp.ne.s32.totalorder %s122, %s125
      %p131 = scmp.eq.s32.totalorder %s22, 0
      %p132 = por %p130, %p131
      %p133 = scmp.ne.s32.totalorder %s122, %s125
      %p134 = scmp.eq.s32.totalorder %s27, 1
      %p135 = por %p133, %p134
      %p136 = scmp.ne.s32.totalorder %s125, %s126
      %p137 = scmp.eq.s32.totalorder %s27, 0
      %p138 = por %p136, %p137
      %p139 = scmp.ne.s32.totalorder %s125, %s126
      %p140 = scmp.eq.s32.totalorder %s28, 1
      %p141 = por %p139, %p140
      %p143 = scmp.ne.s32.totalorder %s126, %s142
      %p144 = scmp.eq.s32.totalorder %s28, 0
      %p145 = por %p143, %p144
      %s147 = sadd.s32 %s146, 1
      %p150 = scmp.eq.s32.totalorder %s22, 1
      %p151 = scmp.ne.s32.totalorder %s146, %s148
      %p152 = scmp.eq.s32.totalorder %s22, 0
      %p153 = por %p151, %p152
      %p154 = scmp.ne.s32.totalorder %s146, %s148
      %p155 = scmp.eq.s32.totalorder %s27, 1
      %p156 = por %p154, %p155
      %p157 = scmp.ne.s32.totalorder %s148, %s149
      %p158 = scmp.eq.s32.totalorder %s27, 0
      %p159 = por %p157, %p158
      %p160 = scmp.ne.s32.totalorder %s148, %s149
      %p161 = scmp.eq.s32.totalorder %s28, 1
      %p162 = por %p160, %p161
      %p164 = scmp.ne.s32.totalorder %s149, %s163
      %p165 = scmp.eq.s32.totalorder %s28, 0
      %p166 = por %p164, %p165
      %s168 = sadd.s32 %s167, 1
      %p171 = scmp.eq.s32.totalorder %s22, 1
      %p172 = scmp.ne.s32.totalorder %s167, %s169
      %p173 = scmp.eq.s32.totalorder %s22, 0
      %p174 = por %p172, %p173
      %p175 = scmp.ne.s32.totalorder %s167, %s169
      %p176 = scmp.eq.s32.totalorder %s27, 1
      %p177 = por %p175, %p176
      %p178 = scmp.ne.s32.totalorder %s169, %s170
      %p179 = scmp.eq.s32.totalorder %s27, 0
      %p180 = por %p178, %p179
      %p181 = scmp.ne.s32.totalorder %s169, %s170
      %p182 = scmp.eq.s32.totalorder %s28, 1
      %p183 = por %p181, %p182
      %p185 = scmp.ne.s32.totalorder %s170, %s184
      %p186 = scmp.eq.s32.totalorder %s28, 0
      %p187 = por %p185, %p186
      %s189 = sadd.s32 %s188, 1
      %p192 = scmp.eq.s32.totalorder %s22, 1
      %p193 = scmp.ne.s32.totalorder %s188, %s190
      %p194 = scmp.eq.s32.totalorder %s22, 0
      %p195 = por %p193, %p194
      %p196 = scmp.ne.s32.totalorder %s188, %s190
      %p197 = scmp.eq.s32.totalorder %s27, 1
      %p198 = por %p196, %p197
      %p199 = scmp.ne.s32.totalorder %s190, %s191
      %p200 = scmp.eq.s32.totalorder %s27, 0
      %p201 = por %p199, %p200
      %p202 = scmp.ne.s32.totalorder %s190, %s191
      %p203 = scmp.eq.s32.totalorder %s28, 1
      %p204 = por %p202, %p203
      %p206 = scmp.ne.s32.totalorder %s191, %s205
      %p207 = scmp.eq.s32.totalorder %s28, 0
      %p208 = por %p206, %p207
      %s210 = sadd.s32 %s209, 1
      %p213 = scmp.eq.s32.totalorder %s22, 1
      %p214 = scmp.ne.s32.totalorder %s209, %s211
      %p215 = scmp.eq.s32.totalorder %s22, 0
      %p216 = por %p214, %p215
      %p217 = scmp.ne.s32.totalorder %s209, %s211
      %p218 = scmp.eq.s32.totalorder %s27, 1
      %p219 = por %p217, %p218
      %p220 = scmp.ne.s32.totalorder %s211, %s212
      %p221 = scmp.eq.s32.totalorder %s27, 0
      %p222 = por %p220, %p221
      %p223 = scmp.ne.s32.totalorder %s211, %s212
      %p224 = scmp.eq.s32.totalorder %s28, 1
      %p225 = por %p223, %p224
      %p227 = scmp.ne.s32.totalorder %s212, %s226
      %p228 = scmp.eq.s32.totalorder %s28, 0
      %p229 = por %p227, %p228
      %s231 = sadd.s32 %s230, 1
      %p234 = scmp.eq.s32.totalorder %s22, 1
      %p235 = scmp.ne.s32.totalorder %s230, %s232
      %p236 = scmp.eq.s32.totalorder %s22, 0
      %p237 = por %p235, %p236
      %p238 = scmp.ne.s32.totalorder %s230, %s232
      %p239 = scmp.eq.s32.totalorder %s27, 1
      %p240 = por %p238, %p239
      %p241 = scmp.ne.s32.totalorder %s232, %s233
      %p242 = scmp.eq.s32.totalorder %s27, 0
      %p243 = por %p241, %p242
      %p244 = scmp.ne.s32.totalorder %s232, %s233
      %p245 = scmp.eq.s32.totalorder %s28, 1
      %p246 = por %p244, %p245
      %p248 = scmp.ne.s32.totalorder %s233, %s247
      %p249 = scmp.eq.s32.totalorder %s28, 0
      %p250 = por %p248, %p249
      %s251 = ssub.s32 %s29, %s41
      %p252 = scmp.eq.s32.totalorder %s251, 0
      %s254 = sadd.s32 %s253, 1
      %s255 = scalar_select %p252, %s253, %s254
      %p258 = pneg %p252
      %p259 = scmp.eq.s32.totalorder %s22, 1
      %p260 = por %p258, %p259
      %p261 = scmp.ne.s32.totalorder %s253, %s256
      %p262 = scmp.eq.s32.totalorder %s22, 0
      %p263 = por %p261, %p262
      %p264 = scmp.ne.s32.totalorder %s253, %s256
      %p265 = scmp.eq.s32.totalorder %s27, 1
      %p266 = por %p264, %p265
      %p267 = scmp.ne.s32.totalorder %s256, %s257
      %p268 = scmp.eq.s32.totalorder %s27, 0
      %p269 = por %p267, %p268
      %p270 = scmp.ne.s32.totalorder %s256, %s257
      %p271 = scmp.eq.s32.totalorder %s28, 1
      %p272 = por %p270, %p271
      %p274 = scmp.ne.s32.totalorder %s257, %s273
      %p275 = scmp.eq.s32.totalorder %s28, 0
      %p276 = por %p274, %p275
      %p277 = scmp.le.s32.totalorder 1, %s22
      %p278 = scmp.lt.s32.totalorder %s22, 3
      %p279 = pnand %p277, %p278
      %p280 = pneg %p279
      // Predicated region
      $region9: #{tpu_custom_call.1} parent=5 // pred_check
        _
      $region10: #{tpu_custom_call.1} parent=5 // pred_check_branch
        %282 = sbr.rel (%p279) target = $region12
      $region11: #{tpu_custom_call.1} parent=5 // pred_region
        %s283 = ssub.s32 %s22, 1
        // Predicated region
        $region13: #{tpu_custom_call.1} parent=11 // pred_check
          %p284 = pneg %p60
        $region14: #{tpu_custom_call.1} parent=11 // pred_check_branch
          %286 = sbr.rel (%p284) target = $region16
        $region15: #{tpu_custom_call.1} parent=11 // pred_region
          %s287 = smul.u32 4, %s31
          %s289 = ssub.s32 512, 512
          %290 = vsyncadd [#allocation5], %s289
          %s291 = smul.addr %s287, 128
          %s292 = scalar_lea.hbm %s0, %s291
          %s293 = sshll.u32 [#allocation4], 4
          %s294 = int_to_ptr.vmem [resolvable:$true] %s293
          %299 = dma.hbm_to_vmem [thread:$0]  %s292, 512, %s294, [#allocation5], 128, 128, 8
        $region16: #{tpu_custom_call.1} parent=11 // pred_fallthru
          _
        // Predicated region
        $region17: #{tpu_custom_call.1} parent=11 // pred_check
          %p300 = pneg %p159
        $region18: #{tpu_custom_call.1} parent=11 // pred_check_branch
          %302 = sbr.rel (%p300) target = $region20
        $region19: #{tpu_custom_call.1} parent=11 // pred_region
          _
        $region20: #{tpu_custom_call.1} parent=11 // pred_fallthru
          _
        // Predicated region
        $region21: #{tpu_custom_call.1} parent=11 // pred_check
          %p303 = pneg %p180
        $region22: #{tpu_custom_call.1} parent=11 // pred_check_branch
          %305 = sbr.rel (%p303) target = $region24
        $region23: #{tpu_custom_call.1} parent=11 // pred_region
          _
        $region24: #{tpu_custom_call.1} parent=11 // pred_fallthru
          _
        // Predicated region
        $region25: #{tpu_custom_call.1} parent=11 // pred_check
          %p306 = pneg %p201
        $region26: #{tpu_custom_call.1} parent=11 // pred_check_branch
          %308 = sbr.rel (%p306) target = $region28
        $region27: #{tpu_custom_call.1} parent=11 // pred_region
          _
        $region28: #{tpu_custom_call.1} parent=11 // pred_fallthru
          _
        // Predicated region
        $region29: #{tpu_custom_call.1} parent=11 // pred_check
          %p309 = pneg %p222
        $region30: #{tpu_custom_call.1} parent=11 // pred_check_branch
          %311 = sbr.rel (%p309) target = $region32
        $region31: #{tpu_custom_call.1} parent=11 // pred_region
          _
        $region32: #{tpu_custom_call.1} parent=11 // pred_fallthru
          _
        // Predicated region
        $region33: #{tpu_custom_call.1} parent=11 // pred_check
          %p312 = pneg %p243
        $region34: #{tpu_custom_call.1} parent=11 // pred_check_branch
          %314 = sbr.rel (%p312) target = $region36
        $region35: #{tpu_custom_call.1} parent=11 // pred_region
          _
        $region36: #{tpu_custom_call.1} parent=11 // pred_fallthru
          _
      $region12: #{tpu_custom_call.1} parent=5 // pred_fallthru
        _
      %p315 = scmp.lt.s32.totalorder %s22, 2
      // Predicated region
      $region37: #{tpu_custom_call.1} parent=5 // pred_check
        %p316 = pneg %p315
      $region38: #{tpu_custom_call.1} parent=5 // pred_check_branch
        %318 = sbr.rel (%p316) target = $region40
      $region39: #{tpu_custom_call.1} parent=5 // pred_region
        // Predicated region
        $region41: #{tpu_custom_call.1} parent=39 // pred_check
          %p319 = pneg %p80
        $region42: #{tpu_custom_call.1} parent=39 // pred_check_branch
          %321 = sbr.rel (%p319) target = $region44
        $region43: #{tpu_custom_call.1} parent=39 // pred_region
          %s322 = sand.u32 %s22, 1
          %s323 = scalar_lea.sflag [#allocation8], %s322
          %s324 = sand.u32 %s70, 1
          %s325 = smul.addr %s324, 64
          %s326 = scalar_lea.vmem [#allocation7], %s325
          %s328 = ssub.s32 1024, 1024
          %329 = vsyncadd %s323, %s328
          %s330 = smul.addr %s30, 64
          %s331 = scalar_lea.hbm %s1, %s330
          %s332 = sshll.u32 %s326, 4
          %s333 = int_to_ptr.vmem [resolvable:$true] %s332
          %338 = dma.hbm_to_vmem [thread:$0]  %s331, 1024, %s333, %s323, 128, 64, 4
        $region44: #{tpu_custom_call.1} parent=39 // pred_fallthru
          _
        // Predicated region
        $region45: #{tpu_custom_call.1} parent=39 // pred_check
          %p339 = pneg %p106
        $region46: #{tpu_custom_call.1} parent=39 // pred_check_branch
          %341 = sbr.rel (%p339) target = $region48
        $region47: #{tpu_custom_call.1} parent=39 // pred_region
          %p342 = scmp.lt.s32.totalorder %s30, 1
          %s343 = scalar_select %p342, %s30, 1
          %s344 = scalar_lea.vmem %s2, %s343
        $region48: #{tpu_custom_call.1} parent=39 // pred_fallthru
          _
        // Predicated region
        $region49: #{tpu_custom_call.1} parent=39 // pred_check
          %p345 = pneg %p132
        $region50: #{tpu_custom_call.1} parent=39 // pred_check_branch
          %347 = sbr.rel (%p345) target = $region52
        $region51: #{tpu_custom_call.1} parent=39 // pred_region
          %s348 = sand.u32 %s22, 1
          %s349 = scalar_lea.sflag [#allocation8], %s348
          %s350 = sand.u32 %s122, 1
          %s351 = smul.addr %s350, 64
          %s352 = scalar_lea.vmem [#allocation9], %s351
          %s353 = smul.u32 16, %s30
          %s355 = ssub.s32 1024, 1024
          %356 = vsyncadd %s349, %s355
          %s357 = smul.addr %s353, 64
          %s358 = scalar_lea.hbm %s3, %s357
          %s359 = sshll.u32 %s352, 4
          %s360 = int_to_ptr.vmem [resolvable:$true] %s359
          %365 = dma.hbm_to_vmem [thread:$0]  %s358, 1024, %s360, %s349, 64, 64, 4
        $region52: #{tpu_custom_call.1} parent=39 // pred_fallthru
          _
      $region40: #{tpu_custom_call.1} parent=5 // pred_fallthru
        _
      %p366 = scmp.le.s32.totalorder 1, %s22
      %p367 = scmp.lt.s32.totalorder %s22, 3
      %p368 = pnand %p366, %p367
      %p369 = pneg %p368
      // Predicated region
      $region53: #{tpu_custom_call.1} parent=5 // pred_check
        _
      $region54: #{tpu_custom_call.1} parent=5 // pred_check_branch
        %371 = sbr.rel (%p368) target = $region56
      $region55: #{tpu_custom_call.1} parent=5 // pred_region
        %s372 = ssub.s32 %s22, 1
        // Predicated region
        $region57: #{tpu_custom_call.1} parent=55 // pred_check
          %p373 = pneg %p60
        $region58: #{tpu_custom_call.1} parent=55 // pred_check_branch
          %375 = sbr.rel (%p373) target = $region60
        $region59: #{tpu_custom_call.1} parent=55 // pred_region
          %376 = dma.done [#allocation5], 512
        $region60: #{tpu_custom_call.1} parent=55 // pred_fallthru
          _
        %s377 = sand.u32 %s27, 1
        %s378 = scalar_lea.sflag [#allocation8], %s377
        %s379 = sand.u32 %s73, 1
        %s380 = smul.addr %s379, 64
        %s381 = scalar_lea.vmem [#allocation7], %s380
        // Predicated region
        $region61: #{tpu_custom_call.1} parent=55 // pred_check
          %p382 = pneg %p86
        $region62: #{tpu_custom_call.1} parent=55 // pred_check_branch
          %384 = sbr.rel (%p382) target = $region64
        $region63: #{tpu_custom_call.1} parent=55 // pred_region
          %385 = dma.done %s378, 1024
        $region64: #{tpu_custom_call.1} parent=55 // pred_fallthru
          _
        %s386 = sand.u32 %s27, 1
        %s387 = scalar_lea.sflag [#allocation8], %s386
        %s388 = sand.u32 %s125, 1
        %s389 = smul.addr %s388, 64
        %s390 = scalar_lea.vmem [#allocation9], %s389
        // Predicated region
        $region65: #{tpu_custom_call.1} parent=55 // pred_check
          %p391 = pneg %p138
        $region66: #{tpu_custom_call.1} parent=55 // pred_check_branch
          %393 = sbr.rel (%p391) target = $region68
        $region67: #{tpu_custom_call.1} parent=55 // pred_region
          %394 = dma.done %s387, 1024
        $region68: #{tpu_custom_call.1} parent=55 // pred_fallthru
          _
        %p395 = pneg %p60
        %p396 = pneg %p57
        %s397 = sand.u32 %s27, 1
        %s398 = scalar_lea.sflag [#allocation8], %s397
        %s399 = sand.u32 %s73, 1
        %s400 = smul.addr %s399, 64
        %s401 = scalar_lea.vmem [#allocation7], %s400
        %p402 = pneg %p86
        %p403 = pneg %p83
        %p404 = scmp.lt.s32.totalorder %s32, 1
        %s405 = scalar_select %p404, %s32, 1
        %s406 = scalar_lea.vmem %s2, %s405
        %p407 = pneg %p112
        %p408 = pneg %p109
        %s409 = sand.u32 %s27, 1
        %s410 = scalar_lea.sflag [#allocation8], %s409
        %s411 = sand.u32 %s125, 1
        %s412 = smul.addr %s411, 64
        %s413 = scalar_lea.vmem [#allocation9], %s412
        %p414 = pneg %p138
        %p415 = pneg %p135
        %p416 = pneg %p159
        %p417 = pneg %p156
        %p418 = pneg %p180
        %p419 = pneg %p177
        %p420 = pneg %p201
        %p421 = pneg %p198
        %p422 = pneg %p222
        %p423 = pneg %p219
        %p424 = pneg %p243
        %p425 = pneg %p240
        %p426 = pneg %p269
        %p427 = pneg %p266
        %s428 = smul.u32 4, %s31
        %p429 = scmp.lt.s32.totalorder %s32, 1
        %s430 = scalar_select %p429, %s32, 1
        %s431 = scalar_lea.vmem %s2, %s430
        %s432 = smul.u32 16, %s32
        %s433 = smul.u32 4, %s31
        %p435 = scmp.eq.s32.totalorder %s32, 0
        // Predicated region
        $region69: #{tpu_custom_call.1} parent=55 // pred_check
          %p436 = pneg %p435
        $region70: #{tpu_custom_call.1} parent=55 // pred_check_branch
          %438 = sbr.rel (%p436) target = $region72
        $region71: #{tpu_custom_call.1} parent=55 // pred_region
          %439 = vst [vmem:[#allocation2] sm:$0xff] 0.0
          %440 = vst [vmem:[#allocation2 + $0x8] sm:$0xff] 0.0
          %441 = vst [vmem:[#allocation2 + $0x10] sm:$0xff] 0.0
          %442 = vst [vmem:[#allocation2 + $0x18] sm:$0xff] 0.0
        $region72: #{tpu_custom_call.1} parent=55 // pred_fallthru
          _
        %v443 = vld [vmem:[#allocation4] sm:$0xff]
        %v444 = vld [vmem:[#allocation4 + $0x8] sm:$0xff]
        %v445 = vld [vmem:[#allocation4 + $0x10] sm:$0xff]
        %v446 = vld [vmem:[#allocation4 + $0x18] sm:$0xff]
        %v447 = vpack.c.bf16 %v444, %v443
        %v448 = vpack.c.bf16 %v446, %v445
        %v449 = vld [vmem:[%s381] sm:$0xf]
        %v450 = vld [vmem:[%s381 + $0x4] sm:$0xf]
        %v451 = vld [vmem:[%s381 + $0x8] sm:$0xf]
        %v452 = vld [vmem:[%s381 + $0xc] sm:$0xf]
        %v453 = vld [vmem:[%s381 + $0x10] sm:$0xf]
        %v454 = vld [vmem:[%s381 + $0x14] sm:$0xf]
        %v455 = vld [vmem:[%s381 + $0x18] sm:$0xf]
        %v456 = vld [vmem:[%s381 + $0x1c] sm:$0xf]
        %v457 = vld [vmem:[%s381 + $0x20] sm:$0xf]
        %v458 = vld [vmem:[%s381 + $0x24] sm:$0xf]
        %v459 = vld [vmem:[%s381 + $0x28] sm:$0xf]
        %v460 = vld [vmem:[%s381 + $0x2c] sm:$0xf]
        %v461 = vld [vmem:[%s381 + $0x30] sm:$0xf]
        %v462 = vld [vmem:[%s381 + $0x34] sm:$0xf]
        %v463 = vld [vmem:[%s381 + $0x38] sm:$0xf]
        %v464 = vld [vmem:[%s381 + $0x3c] sm:$0xf]
        %v465 = vld [vmem:[%s431] sm:$0x1]
        %v467 = vlaneseq
        %v468 = vshrl.u32 %v467, 7
        %v469 = vsub.s32 0, %v468
        %v470 = vrot.slane %v465, %v469
        %v488 = vunpack.c.l.b16 %v449
        %v489 = vunpack.c.l.b16 %v450
        %v490 = vunpack.c.l.b16 %v451
        %v491 = vunpack.c.l.b16 %v452
        %v492 = vunpack.c.l.b16 %v453
        %v493 = vunpack.c.l.b16 %v454
        %v494 = vunpack.c.l.b16 %v455
        %v495 = vunpack.c.l.b16 %v456
        %v496 = vunpack.c.l.b16 %v457
        %v497 = vunpack.c.l.b16 %v458
        %v498 = vunpack.c.l.b16 %v459
        %v499 = vunpack.c.l.b16 %v460
        %v500 = vunpack.c.l.b16 %v461
        %v501 = vunpack.c.l.b16 %v462
        %v502 = vunpack.c.l.b16 %v463
        %v503 = vunpack.c.l.b16 %v464
        %v504 = vpack.c.b16 %v489, %v488
        %v505 = vpack.c.b16 %v491, %v490
        %v506 = vpack.c.b16 %v493, %v492
        %v507 = vpack.c.b16 %v495, %v494
        %v508 = vpack.c.b16 %v497, %v496
        %v509 = vpack.c.b16 %v499, %v498
        %v510 = vpack.c.b16 %v501, %v500
        %v511 = vpack.c.b16 %v503, %v502
        %520 = vmatprep.subr.bf16.mxu0 0
        %521 = vmatpush1.bf16.msra.mxu0 %v504
        %522 = vmatprep.subr.bf16.mxu0 0
        %523 = vmatpush1.bf16.msra.mxu0 %v505
        %524 = vmatprep.subr.bf16.mxu0 0
        %525 = vmatpush1.bf16.msra.mxu0 %v506
        %526 = vmatprep.subr.bf16.mxu0 0
        %527 = vmatpush1.bf16.msra.mxu0 %v507
        %528 = vmatprep.subr.bf16.mxu0 0
        %529 = vmatpush1.bf16.msra.mxu0 %v508
        %530 = vmatprep.subr.bf16.mxu0 0
        %531 = vmatpush1.bf16.msra.mxu0 %v509
        %532 = vmatprep.subr.bf16.mxu0 0
        %533 = vmatpush1.bf16.msra.mxu0 %v510
        %534 = vmatprep.subr.bf16.mxu0 0
        %535 = vmatpush1.bf16.msra.mxu0 %v511
        %536 = vmatprep.subr.bf16.mxu0 0
        %537 = vmatpush1.bf16.msra.mxu0 0
        %538 = vmatprep.subr.bf16.mxu0 0
        %539 = vmatpush1.bf16.msra.mxu0 0
        %540 = vmatprep.subr.bf16.mxu0 0
        %541 = vmatpush1.bf16.msra.mxu0 0
        %542 = vmatprep.subr.bf16.mxu0 0
        %543 = vmatpush1.bf16.msra.mxu0 0
        %544 = vmatprep.subr.bf16.mxu0 0
        %545 = vmatpush1.bf16.msra.mxu0 0
        %546 = vmatprep.subr.bf16.mxu0 0
        %547 = vmatpush1.bf16.msra.mxu0 0
        %548 = vmatprep.subr.bf16.mxu0 0
        %549 = vmatpush1.bf16.msra.mxu0 0
        %550 = vmatprep.subr.bf16.mxu0 0
        %551 = vmatpush1.bf16.msra.mxu0 0
        %552 = vmatprep.mubr.bf16.mxu0 0
        %553 = vmatmul.mubr.bf16.gmra.mrb[0].mxu0 %v447
        %v554 = vpop.f32.mrb[0].mxu0
        %v555 = vadd.f32 %v470, %v554
        %v556 = vpop.f32.mrb[0].mxu0
        %v557 = vpop.f32.mrb[0].mxu0
        %v558 = vadd.f32 %v470, %v557
        %v559 = vpop.f32.mrb[0].mxu0
        %560 = vmatprep.mubr.bf16.mxu0 0
        %561 = vmatmul.mubr.bf16.gmra.mrb[0].mxu0 %v448
        %v562 = vpop.f32.mrb[0].mxu0
        %v563 = vadd.f32 %v470, %v562
        %v564 = vpop.f32.mrb[0].mxu0
        %v565 = vpop.f32.mrb[0].mxu0
        %v566 = vadd.f32 %v470, %v565
        %v567 = vpop.f32.mrb[0].mxu0
        %568 = vdwg.mxu0
        %v569 = vmul.f32 %v555, 0.5
        %v570 = vmul.f32 %v558, 0.5
        %v571 = vmul.f32 %v563, 0.5
        %v572 = vmul.f32 %v566, 0.5
        %v573 = vmul.f32 %v555, 0.70710677
        %v574 = vmul.f32 %v558, 0.70710677
        %v575 = vmul.f32 %v563, 0.70710677
        %v576 = vmul.f32 %v566, 0.70710677
        %v577 = verf.f32.pop %v573
        %v578 = verf.f32.pop %v574
        %v579 = verf.f32.pop %v575
        %v580 = verf.f32.pop %v576
        %v581 = vadd.f32 %v577, 1.0
        %v582 = vadd.f32 %v578, 1.0
        %v583 = vadd.f32 %v579, 1.0
        %v584 = vadd.f32 %v580, 1.0
        %v585 = vmul.f32 %v569, %v581
        %v586 = vmul.f32 %v570, %v582
        %v587 = vmul.f32 %v571, %v583
        %v588 = vmul.f32 %v572, %v584
        %v589 = vld [vmem:[#allocation2] sm:$0xff]
        %v590 = vld [vmem:[#allocation2 + $0x8] sm:$0xff]
        %v591 = vld [vmem:[#allocation2 + $0x10] sm:$0xff]
        %v592 = vld [vmem:[#allocation2 + $0x18] sm:$0xff]
        %v593 = vpack.c.bf16 %v586, %v585
        %v594 = vpack.c.bf16 %v588, %v587
        %v595 = vld [vmem:[%s390] sm:$0xf]
        %v596 = vld [vmem:[%s390 + $0x4] sm:$0xf]
        %v597 = vld [vmem:[%s390 + $0x8] sm:$0xf]
        %v598 = vld [vmem:[%s390 + $0xc] sm:$0xf]
        %v599 = vld [vmem:[%s390 + $0x10] sm:$0xf]
        %v600 = vld [vmem:[%s390 + $0x14] sm:$0xf]
        %v601 = vld [vmem:[%s390 + $0x18] sm:$0xf]
        %v602 = vld [vmem:[%s390 + $0x1c] sm:$0xf]
        %v603 = vld [vmem:[%s390 + $0x20] sm:$0xf]
        %v604 = vld [vmem:[%s390 + $0x24] sm:$0xf]
        %v605 = vld [vmem:[%s390 + $0x28] sm:$0xf]
        %v606 = vld [vmem:[%s390 + $0x2c] sm:$0xf]
        %v607 = vld [vmem:[%s390 + $0x30] sm:$0xf]
        %v608 = vld [vmem:[%s390 + $0x34] sm:$0xf]
        %v609 = vld [vmem:[%s390 + $0x38] sm:$0xf]
        %v610 = vld [vmem:[%s390 + $0x3c] sm:$0xf]
        %v627 = vunpack.c.l.b16 %v595
        %v628 = vunpack.c.l.b16 %v596
        %v629 = vunpack.c.l.b16 %v597
        %v630 = vunpack.c.l.b16 %v598
        %v631 = vunpack.c.l.b16 %v599
        %v632 = vunpack.c.l.b16 %v600
        %v633 = vunpack.c.l.b16 %v601
        %v634 = vunpack.c.l.b16 %v602
        %v635 = vunpack.c.l.b16 %v603
        %v636 = vunpack.c.l.b16 %v604
        %v637 = vunpack.c.l.b16 %v605
        %v638 = vunpack.c.l.b16 %v606
        %v639 = vunpack.c.l.b16 %v607
        %v640 = vunpack.c.l.b16 %v608
        %v641 = vunpack.c.l.b16 %v609
        %v642 = vunpack.c.l.b16 %v610
        %v643 = vpack.c.b16 %v628, %v627
        %v644 = vpack.c.b16 %v630, %v629
        %v645 = vpack.c.b16 %v632, %v631
        %v646 = vpack.c.b16 %v634, %v633
        %v647 = vpack.c.b16 %v636, %v635
        %v648 = vpack.c.b16 %v638, %v637
        %v649 = vpack.c.b16 %v640, %v639
        %v650 = vpack.c.b16 %v642, %v641
        %659 = vmatprep.subr.bf16.mxu0 0
        %660 = vmatpush1.bf16.msra.mxu0 %v643
        %661 = vmatprep.subr.bf16.mxu0 0
        %662 = vmatpush1.bf16.msra.mxu0 %v644
        %663 = vmatprep.subr.bf16.mxu0 0
        %664 = vmatpush1.bf16.msra.mxu0 %v645
        %665 = vmatprep.subr.bf16.mxu0 0
        %666 = vmatpush1.bf16.msra.mxu0 %v646
        %667 = vmatprep.subr.bf16.mxu0 0
        %668 = vmatpush1.bf16.msra.mxu0 %v647
        %669 = vmatprep.subr.bf16.mxu0 0
        %670 = vmatpush1.bf16.msra.mxu0 %v648
        %671 = vmatprep.subr.bf16.mxu0 0
        %672 = vmatpush1.bf16.msra.mxu0 %v649
        %673 = vmatprep.subr.bf16.mxu0 0
        %674 = vmatpush1.bf16.msra.mxu0 %v650
        %675 = vmatprep.subr.bf16.mxu0 0
        %676 = vmatpush1.bf16.msra.mxu0 0
        %677 = vmatprep.subr.bf16.mxu0 0
        %678 = vmatpush1.bf16.msra.mxu0 0
        %679 = vmatprep.subr.bf16.mxu0 0
        %680 = vmatpush1.bf16.msra.mxu0 0
        %681 = vmatprep.subr.bf16.mxu0 0
        %682 = vmatpush1.bf16.msra.mxu0 0
        %683 = vmatprep.subr.bf16.mxu0 0
        %684 = vmatpush1.bf16.msra.mxu0 0
        %685 = vmatprep.subr.bf16.mxu0 0
        %686 = vmatpush1.bf16.msra.mxu0 0
        %687 = vmatprep.subr.bf16.mxu0 0
        %688 = vmatpush1.bf16.msra.mxu0 0
        %689 = vmatprep.subr.bf16.mxu0 0
        %690 = vmatpush1.bf16.msra.mxu0 0
        %691 = vmatprep.mubr.bf16.mxu0 0
        %692 = vmatmul.mubr.bf16.gmra.mrb[0].mxu0 %v593
        %v693 = vpop.f32.mrb[0].mxu0
        %v694 = vadd.f32 0.0, %v693
        %v695 = vpop.f32.mrb[0].mxu0
        %v696 = vpop.f32.mrb[0].mxu0
        %v697 = vadd.f32 0.0, %v696
        %v698 = vpop.f32.mrb[0].mxu0
        %699 = vmatprep.mubr.bf16.mxu0 0
        %700 = vmatmul.mubr.bf16.gmra.mrb[0].mxu0 %v594
        %v701 = vpop.f32.mrb[0].mxu0
        %v702 = vadd.f32 0.0, %v701
        %v703 = vpop.f32.mrb[0].mxu0
        %v704 = vpop.f32.mrb[0].mxu0
        %v705 = vadd.f32 0.0, %v704
        %v706 = vpop.f32.mrb[0].mxu0
        %707 = vdwg.mxu0
        %v708 = vadd.f32 %v589, %v694
        %v709 = vadd.f32 %v590, %v697
        %v710 = vadd.f32 %v591, %v702
        %v711 = vadd.f32 %v592, %v705
        %712 = vst [vmem:[#allocation2] sm:$0xff] %v708
        %713 = vst [vmem:[#allocation2 + $0x8] sm:$0xff] %v709
        %714 = vst [vmem:[#allocation2 + $0x10] sm:$0xff] %v710
        %715 = vst [vmem:[#allocation2 + $0x18] sm:$0xff] %v711
        %p716 = scmp.eq.s32.totalorder %s32, 1
        // Predicated region
        $region73: #{tpu_custom_call.1} parent=55 // pred_check
          %p717 = pneg %p716
        $region74: #{tpu_custom_call.1} parent=55 // pred_check_branch
          %719 = sbr.rel (%p717) target = $region76
        $region75: #{tpu_custom_call.1} parent=55 // pred_region
          %v720 = vld [vmem:[#allocation4] sm:$0xff]
          %v721 = vld [vmem:[#allocation4 + $0x8] sm:$0xff]
          %v722 = vld [vmem:[#allocation4 + $0x10] sm:$0xff]
          %v723 = vld [vmem:[#allocation4 + $0x18] sm:$0xff]
          %v724 = vld [vmem:[%s5] sm:$0x1]
          %v726 = vlaneseq
          %v727 = vshrl.u32 %v726, 7
          %v728 = vsub.s32 0, %v727
          %v729 = vrot.slane %v724, %v728
          %v731 = vmul.f32 %v720, %v729
          %v732 = vmul.f32 %v721, %v729
          %v733 = vmul.f32 %v722, %v729
          %v734 = vmul.f32 %v723, %v729
          %735 = vadd.xlane.f32.xlu0 %v731
          %v736 = vpop.xlane.xlu0 %735
          %737 = vadd.xlane.f32.xlu0 %v732
          %v738 = vpop.xlane.xlu0 %737
          %739 = vadd.xlane.f32.xlu0 %v733
          %v740 = vpop.xlane.xlu0 %739
          %741 = vadd.xlane.f32.xlu0 %v734
          %v742 = vpop.xlane.xlu0 %741
          %v743 = vld [vmem:[#allocation3] sm:$0x1]
          %v745 = vlaneseq
          %v746 = vshrl.u32 %v745, 7
          %v747 = vsub.s32 0, %v746
          %v748 = vrot.slane %v743, %v747
          %v750 = vadd.f32 %v736, %v748
          %v751 = vadd.f32 %v738, %v748
          %v752 = vadd.f32 %v740, %v748
          %v753 = vadd.f32 %v742, %v748
          %v754 = vxor.u32 %v750, 2147483648
          %v755 = vxor.u32 %v751, 2147483648
          %v756 = vxor.u32 %v752, 2147483648
          %v757 = vxor.u32 %v753, 2147483648
          %v758 = vmul.f32 %v754, 1.442695
          %v759 = vpow.pop %v758
          %v760 = vmul.f32 %v755, 1.442695
          %v761 = vpow.pop %v760
          %v762 = vmul.f32 %v756, 1.442695
          %v763 = vpow.pop %v762
          %v764 = vmul.f32 %v757, 1.442695
          %v765 = vpow.pop %v764
          %v766 = vadd.f32 %v759, 1.0
          %v767 = vadd.f32 %v761, 1.0
          %v768 = vadd.f32 %v763, 1.0
          %v769 = vadd.f32 %v765, 1.0
          %v770 = vrcp.pop %v766
          %v771 = vmul.f32 1.0, %v770
          %v772 = vrcp.pop %v767
          %v773 = vmul.f32 1.0, %v772
          %v774 = vrcp.pop %v768
          %v775 = vmul.f32 1.0, %v774
          %v776 = vrcp.pop %v769
          %v777 = vmul.f32 1.0, %v776
          %v778 = vld [vmem:[#allocation2] sm:$0xff]
          %v779 = vld [vmem:[#allocation2 + $0x8] sm:$0xff]
          %v780 = vld [vmem:[#allocation2 + $0x10] sm:$0xff]
          %v781 = vld [vmem:[#allocation2 + $0x18] sm:$0xff]
          %v782 = vld [vmem:[%s4] sm:$0x1]
          %v784 = vlaneseq
          %v785 = vshrl.u32 %v784, 7
          %v786 = vsub.s32 0, %v785
          %v787 = vrot.slane %v782, %v786
          %v789 = vadd.f32 %v778, %v787
          %v790 = vadd.f32 %v779, %v787
          %v791 = vadd.f32 %v780, %v787
          %v792 = vadd.f32 %v781, %v787
          %794 = vset.pattern.permute.xlu0 0
          %795 = vperm.xlu0 %794, %v771
          %v796 = vpop.permute.xlu0 %795
          %799 = vset.pattern.permute.xlu0 0
          %800 = vperm.xlu0 %799, %v773
          %v801 = vpop.permute.xlu0 %800
          %804 = vset.pattern.permute.xlu0 0
          %805 = vperm.xlu0 %804, %v775
          %v806 = vpop.permute.xlu0 %805
          %809 = vset.pattern.permute.xlu0 0
          %810 = vperm.xlu0 %809, %v777
          %v811 = vpop.permute.xlu0 %810
          %v813 = vmul.f32 %v789, %v796
          %v814 = vmul.f32 %v790, %v801
          %v815 = vmul.f32 %v791, %v806
          %v816 = vmul.f32 %v792, %v811
          %v817 = vadd.f32 %v813, %v720
          %v818 = vadd.f32 %v814, %v721
          %v819 = vadd.f32 %v815, %v722
          %v820 = vadd.f32 %v816, %v723
          %821 = vadd.xlane.f32.xlu0 %v817
          %v822 = vpop.xlane.xlu0 %821
          %823 = vadd.xlane.f32.xlu0 %v818
          %v824 = vpop.xlane.xlu0 %823
          %825 = vadd.xlane.f32.xlu0 %v819
          %v826 = vpop.xlane.xlu0 %825
          %827 = vadd.xlane.f32.xlu0 %v820
          %v828 = vpop.xlane.xlu0 %827
          %v829 = vmul.f32 %v817, %v817
          %v830 = vmul.f32 %v818, %v818
          %v831 = vmul.f32 %v819, %v819
          %v832 = vmul.f32 %v820, %v820
          %833 = vadd.xlane.f32.xlu0 %v829
          %v834 = vpop.xlane.xlu0 %833
          %835 = vadd.xlane.f32.xlu0 %v830
          %v836 = vpop.xlane.xlu0 %835
          %837 = vadd.xlane.f32.xlu0 %v831
          %v838 = vpop.xlane.xlu0 %837
          %839 = vadd.xlane.f32.xlu0 %v832
          %v840 = vpop.xlane.xlu0 %839
          %v841 = vmul.f32 %v822, 0.0078125
          %v842 = vmul.f32 %v824, 0.0078125
          %v843 = vmul.f32 %v826, 0.0078125
          %v844 = vmul.f32 %v828, 0.0078125
          %v845 = vmul.f32 %v834, 0.0078125
          %v846 = vmul.f32 %v836, 0.0078125
          %v847 = vmul.f32 %v838, 0.0078125
          %v848 = vmul.f32 %v840, 0.0078125
          %v849 = vmul.f32 %v841, %v841
          %v850 = vmul.f32 %v842, %v842
          %v851 = vmul.f32 %v843, %v843
          %v852 = vmul.f32 %v844, %v844
          %v853 = vsub.f32 %v845, %v849
          %v854 = vsub.f32 %v846, %v850
          %v855 = vsub.f32 %v847, %v851
          %v856 = vsub.f32 %v848, %v852
          %v857 = vsub.f32 %v817, %v841
          %v858 = vsub.f32 %v818, %v842
          %v859 = vsub.f32 %v819, %v843
          %v860 = vsub.f32 %v820, %v844
          %v861 = vadd.f32 %v853, 1e-05
          %v862 = vadd.f32 %v854, 1e-05
          %v863 = vadd.f32 %v855, 1e-05
          %v864 = vadd.f32 %v856, 1e-05
          %v865 = vrsqrt.pop %v861
          %v866 = vrsqrt.pop %v862
          %v867 = vrsqrt.pop %v863
          %v868 = vrsqrt.pop %v864
          %v869 = vmul.f32 %v857, %v865
          %v870 = vmul.f32 %v858, %v866
          %v871 = vmul.f32 %v859, %v867
          %v872 = vmul.f32 %v860, %v868
          %v873 = vld [vmem:[%s7] sm:$0x1]
          %v875 = vlaneseq
          %v876 = vshrl.u32 %v875, 7
          %v877 = vsub.s32 0, %v876
          %v878 = vrot.slane %v873, %v877
          %v880 = vmul.f32 %v869, %v878
          %v881 = vmul.f32 %v870, %v878
          %v882 = vmul.f32 %v871, %v878
          %v883 = vmul.f32 %v872, %v878
          %v884 = vld [vmem:[%s8] sm:$0x1]
          %v886 = vlaneseq
          %v887 = vshrl.u32 %v886, 7
          %v888 = vsub.s32 0, %v887
          %v889 = vrot.slane %v884, %v888
          %v891 = vadd.f32 %v880, %v889
          %v892 = vadd.f32 %v881, %v889
          %v893 = vadd.f32 %v882, %v889
          %v894 = vadd.f32 %v883, %v889
          %895 = vst [vmem:[#allocation10] sm:$0xff] %v891
          %896 = vst [vmem:[#allocation10 + $0x8] sm:$0xff] %v892
          %897 = vst [vmem:[#allocation10 + $0x10] sm:$0xff] %v893
          %898 = vst [vmem:[#allocation10 + $0x18] sm:$0xff] %v894
        $region76: #{tpu_custom_call.1} parent=55 // pred_fallthru
          _
        // Predicated region
        $region77: #{tpu_custom_call.1} parent=55 // pred_check
          %p899 = pneg %p266
        $region78: #{tpu_custom_call.1} parent=55 // pred_check_branch
          %901 = sbr.rel (%p899) target = $region80
        $region79: #{tpu_custom_call.1} parent=55 // pred_region
          %s902 = smul.u32 4, %s31
          %s904 = ssub.s32 512, 512
          %905 = vsyncadd [#allocation6], %s904
          %s906 = smul.addr %s902, 128
          %s907 = scalar_lea.hbm %s9, %s906
          %s908 = sshll.u32 [#allocation10], 4
          %s909 = int_to_ptr.vmem [resolvable:$true] %s908
          %914 = dma.vmem_to_hbm [thread:$0]  %s909, 512, %s907, [#allocation6], 128, 128, 8
        $region80: #{tpu_custom_call.1} parent=55 // pred_fallthru
          _
        // Predicated region
        $region81: #{tpu_custom_call.1} parent=55 // pred_check
          %p915 = pneg %p266
        $region82: #{tpu_custom_call.1} parent=55 // pred_check_branch
          %917 = sbr.rel (%p915) target = $region84
        $region83: #{tpu_custom_call.1} parent=55 // pred_region
          %918 = dma.done [#allocation6], 512
        $region84: #{tpu_custom_call.1} parent=55 // pred_fallthru
          _
      $region56: #{tpu_custom_call.1} parent=5 // pred_fallthru
        _
      %p919 = scmp.le.s32.totalorder 2, %s22
      // Predicated region
      $region85: #{tpu_custom_call.1} parent=5 // pred_check
        %p920 = pneg %p919
      $region86: #{tpu_custom_call.1} parent=5 // pred_check_branch
        %922 = sbr.rel (%p920) target = $region88
      $region87: #{tpu_custom_call.1} parent=5 // pred_region
        %s923 = ssub.s32 %s22, 2
      $region88: #{tpu_custom_call.1} parent=5 // pred_fallthru
        _
    $region6: #{tpu_custom_call.1} parent=1 // loop_footer
      %s26 = sadd.s32 1, %s22
    $region7: #{tpu_custom_call.1} parent=1 // loop_footer_branch
      %21 = sbr.rel target = $region3
    $region8: #{tpu_custom_call.1} parent=1 // loop_exit
      _
    %924 = vsyncpa [#allocation5], 1
    %s925 = scalar_lea.sflag [#allocation5], 1
    %926 = vsyncpa %s925, 1
    %927 = vsyncpa [#allocation8], 1
    %s928 = scalar_lea.sflag [#allocation8], 1
    %929 = vsyncpa %s928, 1
    %930 = vsyncpa [#allocation6], 1
    %s931 = scalar_lea.sflag [#allocation6], 1
    %932 = vsyncpa %s931, 1

</llo_original>
